<compile_context>
chip_gen: v7x
topology: tpu7x:2x2x1
jax: 0.10.0
libtpu: 0.0.40
codegen_flags: <defaults>
</compile_context>

<pallas_src>
import functools

import jax
import jax.numpy as jnp
from jax import lax
from jax.experimental import pallas as pl
from jax.experimental.pallas import tpu as pltpu

LANE = 128
VMEM_LIMIT = 32 * 1024 * 1024


def _round_up(x, m):
    return (x + m - 1) // m * m


def _pick_rows_per_tile(t_pad, b_pad, target=1024):
    """Largest M tile <= target that divides t_pad*b_pad (multiple of b_pad)."""
    best = b_pad
    for d in range(1, t_pad + 1):
        if t_pad % d == 0 and d * b_pad <= target:
            best = max(best, d * b_pad)
    return best


# -----------------------------------------------------------------------------
# Projection kernels (hoisted out of the recurrence).  bf16 operands on the
# MXU, f32 accumulation, bf16 stored result (halves the HBM round trip of the
# gates buffer between the projection and the recurrence).
# -----------------------------------------------------------------------------
def _proj1_kernel(x_ref, w_ref, b_ref, out_ref):
    out_ref[...] = (
        jnp.dot(x_ref[...], w_ref[...], preferred_element_type=jnp.float32)
        + b_ref[...]
    ).astype(out_ref.dtype)


def input_projection(x, w, b, *, rows_per_tile):
    """x:(M,K) bf16, w:(K,N) bf16, b:(1,N) f32 -> (M,N) bf16 = x @ w + b."""
    m_tot, k_in = x.shape
    n_out = w.shape[1]
    assert m_tot % rows_per_tile == 0
    return pl.pallas_call(
        _proj1_kernel,
        out_shape=jax.ShapeDtypeStruct((m_tot, n_out), jnp.bfloat16),
        grid=(m_tot // rows_per_tile,),
        in_specs=[
            pl.BlockSpec((rows_per_tile, k_in), lambda m: (m, 0)),
            pl.BlockSpec((k_in, n_out), lambda m: (0, 0)),   # resident weights
            pl.BlockSpec((1, n_out), lambda m: (0, 0)),      # folded bias
        ],
        out_specs=pl.BlockSpec((rows_per_tile, n_out), lambda m: (m, 0)),
        compiler_params=pltpu.CompilerParams(
            dimension_semantics=("parallel",),
            vmem_limit_bytes=VMEM_LIMIT),
    )(x, w, b)


def _proj2_kernel(xf_ref, xb_ref, wf_ref, wb_ref, b_ref, out_ref):
    acc = jnp.dot(xf_ref[...], wf_ref[...], preferred_element_type=jnp.float32)
    acc = acc + jnp.dot(xb_ref[...], wb_ref[...],
                        preferred_element_type=jnp.float32)
    out_ref[...] = (acc + b_ref[...]).astype(out_ref.dtype)


def hidden_projection(xf, xb, wf, wb, b, *, rows_per_tile):
    """gates = xf @ wf + xb @ wb + b  (fwd/bwd halves kept separate: no concat)."""
    rows, hp = xf.shape
    n_out = wf.shape[1]
    assert rows % rows_per_tile == 0
    return pl.pallas_call(
        _proj2_kernel,
        out_shape=jax.ShapeDtypeStruct((rows, n_out), jnp.bfloat16),
        grid=(rows // rows_per_tile,),
        in_specs=[
            pl.BlockSpec((rows_per_tile, hp), lambda m: (m, 0)),
            pl.BlockSpec((rows_per_tile, hp), lambda m: (m, 0)),
            pl.BlockSpec((hp, n_out), lambda m: (0, 0)),     # resident weights
            pl.BlockSpec((hp, n_out), lambda m: (0, 0)),
            pl.BlockSpec((1, n_out), lambda m: (0, 0)),
        ],
        out_specs=pl.BlockSpec((rows_per_tile, n_out), lambda m: (m, 0)),
        compiler_params=pltpu.CompilerParams(
            dimension_semantics=("parallel",),
            vmem_limit_bytes=VMEM_LIMIT),
    )(xf, xb, wf, wb, b)


# -----------------------------------------------------------------------------
# Fused bidirectional recurrence, chunked over time.  grid = (time chunks,).
# Each grid step runs BOTH directions: fwd walks chunk c, bwd walks chunk
# nc-1-c, and the two independent chains are interleaved inside the step.
# -----------------------------------------------------------------------------
def _lstm_rec_kernel(len_ref, gxf_ref, gxb_ref, whh_ref,
                     hsf_ref, hsb_ref, hff_ref, hfb_ref,
                     hf_sc, cf_sc, hb_sc, cb_sc, *, tc, hp, nc, unroll):
    c = pl.program_id(0)

    @pl.when(c == 0)
    def _():
        for sc in (hf_sc, cf_sc, hb_sc, cb_sc):
            sc[...] = jnp.zeros_like(sc)

    lengths = len_ref[...]                 # (b_pad, 1) int32, loaded once/chunk
    base_f = c * tc                        # abs timestep of fwd chunk row 0
    base_b = (nc - 1 - c) * tc             # abs timestep of bwd chunk row 0

    def cell(gates, h_prev, c_prev, t_idx):
        i = jax.nn.sigmoid(gates[:, 0 * hp:1 * hp])     # lane-aligned slices
        f = jax.nn.sigmoid(gates[:, 1 * hp:2 * hp])
        g = jnp.tanh(gates[:, 2 * hp:3 * hp])
        o = jax.nn.sigmoid(gates[:, 3 * hp:4 * hp])
        c_new = f * c_prev + i * g
        h_new = o * jnp.tanh(c_new)
        mask = t_idx < lengths                           # packed-seq masking
        return jnp.where(mask, h_new, h_prev), jnp.where(mask, c_new, c_prev)

    def step(s, carry):
        h_f, c_f, h_b, c_b = carry
        lb = tc - 1 - s                     # bwd local row inside its chunk
        # W_hh is read from VMEM *inside* the step (not hoisted) so it never
        # occupies the vreg file across unrolled iterations.  The two small
        # matmuls are issued back-to-back so the independent fwd/bwd chains
        # fill the MXU/EUP/VPU slots while the other waits.
        zf = jnp.dot(h_f.astype(jnp.bfloat16), whh_ref[:, :4 * hp],
                     preferred_element_type=jnp.float32)
        zb = jnp.dot(h_b.astype(jnp.bfloat16), whh_ref[:, 4 * hp:],
                     preferred_element_type=jnp.float32)
        gf = gxf_ref[s].astype(jnp.float32) + zf
        gb = gxb_ref[lb].astype(jnp.float32) + zb
        h_f, c_f = cell(gf, h_f, c_f, base_f + s)
        h_b, c_b = cell(gb, h_b, c_b, base_b + lb)
        hsf_ref[s] = h_f.astype(hsf_ref.dtype)
        hsb_ref[lb] = h_b.astype(hsb_ref.dtype)
        return (h_f, c_f, h_b, c_b)

    hf, cf, hb, cb = lax.fori_loop(
        0, tc, step, (hf_sc[...], cf_sc[...], hb_sc[...], cb_sc[...]),
        unroll=unroll)
    hf_sc[...] = hf
    cf_sc[...] = cf
    hb_sc[...] = hb
    cb_sc[...] = cb

    @pl.when(c == nc - 1)                   # both finals land on the last chunk
    def _():
        hff_ref[...] = hf
        hfb_ref[...] = hb


def lstm_bidir_layer(gates, lengths2d, whh_cat, *, tc, hp, unroll):
    """gates: (T_pad, B_pad, 8*hp) bf16 [fwd|bwd gate lanes];
    whh_cat: (hp, 8*hp) bf16.  Returns (h_seq_fwd, h_seq_bwd, h_fin_fwd,
    h_fin_bwd); h_seq_* are bf16, h_fin_* f32."""
    t_pad, b_pad, _ = gates.shape
    nc = t_pad // tc
    kernel = functools.partial(_lstm_rec_kernel, tc=tc, hp=hp, nc=nc,
                               unroll=unroll)
    return pl.pallas_call(
        kernel,
        out_shape=(
            jax.ShapeDtypeStruct((t_pad, b_pad, hp), jnp.bfloat16),
            jax.ShapeDtypeStruct((t_pad, b_pad, hp), jnp.bfloat16),
            jax.ShapeDtypeStruct((b_pad, hp), jnp.float32),
            jax.ShapeDtypeStruct((b_pad, hp), jnp.float32),
        ),
        grid=(nc,),
        in_specs=[
            pl.BlockSpec((b_pad, 1), lambda c: (0, 0)),                      # lengths
            pl.BlockSpec((tc, b_pad, 4 * hp), lambda c: (c, 0, 0)),          # fwd gates
            pl.BlockSpec((tc, b_pad, 4 * hp), lambda c: (nc - 1 - c, 0, 1)), # bwd gates
            pl.BlockSpec((hp, 8 * hp), lambda c: (0, 0)),                    # W_hh (resident)
        ],
        out_specs=(
            pl.BlockSpec((tc, b_pad, hp), lambda c: (c, 0, 0)),
            pl.BlockSpec((tc, b_pad, hp), lambda c: (nc - 1 - c, 0, 0)),
            pl.BlockSpec((b_pad, hp), lambda c: (0, 0)),
            pl.BlockSpec((b_pad, hp), lambda c: (0, 0)),
        ),
        scratch_shapes=[pltpu.VMEM((b_pad, hp), jnp.float32)] * 4,  # h/c x 2 dirs
        compiler_params=pltpu.CompilerParams(
            dimension_semantics=("arbitrary",),     # serial recurrence axis
            vmem_limit_bytes=VMEM_LIMIT),
    )(lengths2d, gates, gates, whh_cat)


# -----------------------------------------------------------------------------
# Parameter construction (PyTorch-style) and packing into the padded,
# kernel-ready bf16 layout.
# -----------------------------------------------------------------------------
def init_params(key, vocab_size, embedding_dim, hidden_dim, output_dim,
                n_layers, pad_idx):
    H = hidden_dim
    keys = jax.random.split(key, 3 + 8 * n_layers)
    k_it = iter(keys)

    emb = jax.random.normal(next(k_it), (vocab_size, embedding_dim),
                            jnp.float32) * 0.1
    emb = emb.at[pad_idx].set(0.0)                   # padding_idx row is zero

    bound = 1.0 / jnp.sqrt(H)

    def u(k, shape):
        return jax.random.uniform(k, shape, jnp.float32, -bound, bound)

    layers = []
    for layer in range(n_layers):
        in_dim = embedding_dim if layer == 0 else 2 * H
        dirs = []
        for _ in range(2):                           # forward, backward
            w_ih = u(next(k_it), (in_dim, 4 * H))    # stored pre-transposed
            w_hh = u(next(k_it), (H, 4 * H))
            b_ih = u(next(k_it), (4 * H,))
            b_hh = u(next(k_it), (4 * H,))
            dirs.append((w_ih, w_hh, b_ih + b_hh))
        layers.append(tuple(dirs))

    fc_w = u(next(k_it), (output_dim, 2 * H))        # nn.Linear(2H, output_dim)
    fc_b = u(next(k_it), (output_dim,))
    return {"embedding": emb, "lstm_layers": layers,
            "fc_w_t": fc_w.T, "fc_b": fc_b}


def _pad_gate_cols(w, H, Hp):
    """(rows, 4H) -> (rows, 4Hp): gate k's H columns land at [k*Hp : k*Hp+H]."""
    out = jnp.zeros((w.shape[0], 4 * Hp), w.dtype)
    for k in range(4):
        out = out.at[:, k * Hp:k * Hp + H].set(w[:, k * H:(k + 1) * H])
    return out


def _pad_bias(b, H, Hp):
    out = jnp.zeros((4 * Hp,), b.dtype)
    for k in range(4):
        out = out.at[k * Hp:k * Hp + H].set(b[k * H:(k + 1) * H])
    return out


def pack_params(params, hidden_dim):
    H = hidden_dim
    Hp = _round_up(H, LANE)
    emb = params["embedding"]
    vocab, e_dim = emb.shape

    def row_pad(w4hp):                       # (H, 4Hp) -> (Hp, 4Hp)
        return jnp.zeros((Hp, 4 * Hp), jnp.float32).at[:H].set(w4hp)

    layers = []
    for li, ((wih_f, whh_f, b_f), (wih_r, whh_r, b_r)) in enumerate(
            params["lstm_layers"]):
        bias = jnp.concatenate([_pad_bias(b_f, H, Hp),
                                _pad_bias(b_r, H, Hp)])[None, :]      # (1, 8Hp) f32
        whh = jnp.concatenate([row_pad(_pad_gate_cols(whh_f, H, Hp)),
                               row_pad(_pad_gate_cols(whh_r, H, Hp))],
                              axis=1).astype(jnp.bfloat16)            # (Hp, 8Hp)

        if li == 0:
            # Precomputed layer-0 gate table over the vocab: deletes the
            # K=embedding_dim-starved per-token matmul entirely.
            w0 = jnp.concatenate([_pad_gate_cols(wih_f, H, Hp),
                                  _pad_gate_cols(wih_r, H, Hp)],
                                 axis=1).astype(jnp.bfloat16)         # (E, 8Hp)
            rpt = min(512, _round_up(vocab, 16))
            rows_v = _round_up(vocab, rpt)
            emb_p = jnp.zeros((rows_v, e_dim), jnp.bfloat16).at[:vocab].set(
                emb.astype(jnp.bfloat16))
            gate_table = input_projection(emb_p, w0, bias, rows_per_tile=rpt)
            layers.append({"gate_table": gate_table, "whh": whh})
        else:
            # Deep-layer W_ih rows [0:H] act on the fwd hidden, [H:2H] on the
            # bwd hidden -> split into two (Hp, 8Hp) operands (no concat).
            def ih_half(lo, hi):
                return jnp.concatenate(
                    [row_pad(_pad_gate_cols(wih_f[lo:hi], H, Hp)),
                     row_pad(_pad_gate_cols(wih_r[lo:hi], H, Hp))],
                    axis=1).astype(jnp.bfloat16)
            layers.append({"w_f": ih_half(0, H), "w_b": ih_half(H, 2 * H),
                           "bias": bias, "whh": whh})
    return {"layers": layers, "fc_w_t": params["fc_w_t"],
            "fc_b": params["fc_b"]}


# -----------------------------------------------------------------------------
# Full forward pass.
# -----------------------------------------------------------------------------
def lstm_model_forward(text, text_lengths, packed, *, hidden_dim,
                       time_chunk=32, unroll=4, proj_rows_target=1024):
    H = hidden_dim
    Hp = _round_up(H, LANE)
    T, B = text.shape

    tc = min(time_chunk, _round_up(T, 8))
    t_pad = _round_up(T, tc)
    b_pad = _round_up(B, 16)                 # 16: bf16 sublane packing

    text_pad = jnp.zeros((t_pad, b_pad), jnp.int32).at[:T, :B].set(
        text.astype(jnp.int32))
    lengths2d = jnp.zeros((b_pad, 1), jnp.int32).at[:B, 0].set(
        text_lengths.astype(jnp.int32))

    rpt = _pick_rows_per_tile(t_pad, b_pad, proj_rows_target)

    # Layer-0 gates: one gather from the precomputed (vocab, 8*Hp) table.
    gates = packed["layers"][0]["gate_table"][text_pad]   # (t_pad,b_pad,8Hp) bf16

    hsf = hsb = hff = hfb = None
    for li, layer in enumerate(packed["layers"]):
        if li > 0:
            gates = hidden_projection(
                hsf.reshape(t_pad * b_pad, Hp),
                hsb.reshape(t_pad * b_pad, Hp),
                layer["w_f"], layer["w_b"], layer["bias"],
                rows_per_tile=rpt).reshape(t_pad, b_pad, 8 * Hp)
        hsf, hsb, hff, hfb = lstm_bidir_layer(
            gates, lengths2d, layer["whh"], tc=tc, hp=Hp, unroll=unroll)

    # hidden[-2] = last-layer forward final, hidden[-1] = last-layer backward.
    h_f = hff[:B, :H]
    h_r = hfb[:B, :H]
    cat = jnp.concatenate([h_f, h_r], axis=1)            # (B, 2H)
    # TODO(synk): dropout is identity here (eval-mode semantics).
    rel = jnp.maximum(cat, 0.0)
    # Tiny head (output_dim << 128) stays in plain XLA: a pallas_call there is
    # pure launch overhead.
    return rel @ packed["fc_w_t"] + packed["fc_b"]


if __name__ == "__main__":
    vocab_size, embedding_dim, hidden_dim, output_dim = 50, 16, 32, 4
    n_layers, pad_idx = 2, 0
    T, B = 10, 8

    key = jax.random.PRNGKey(0)
    k_par, k_tok, k_len = jax.random.split(key, 3)

    params = init_params(k_par, vocab_size, embedding_dim, hidden_dim,
                         output_dim, n_layers, pad_idx)
    packed = pack_params(params, hidden_dim)

    text_lengths = jax.random.randint(k_len, (B,), 3, T + 1).astype(jnp.int32)
    tokens = jax.random.randint(k_tok, (T, B), 1, vocab_size).astype(jnp.int32)
    time_ix = jnp.arange(T)[:, None]
    text = jnp.where(time_ix < text_lengths[None, :], tokens, pad_idx)

    fwd = jax.jit(functools.partial(lstm_model_forward, hidden_dim=hidden_dim))
    preds = fwd(text, text_lengths, packed)
    jax.block_until_ready(preds)
    assert preds.shape == (B, output_dim)
    assert bool(jnp.all(jnp.isfinite(preds)))
    print("KERNEL_OK")
</pallas_src>

<mosaic_0001>
module attributes {stable_mosaic.version = 11 : i64} {
  func.func @_proj1_kernel(%arg0: i32, %arg1: memref<64x16xbf16, #tpu.memory_space<vmem>>, %arg2: memref<16x1024xbf16, #tpu.memory_space<vmem>>, %arg3: memref<1x1024xf32, #tpu.memory_space<vmem>>, %arg4: memref<64x1024xbf16, #tpu.memory_space<vmem>>) attributes {dimension_semantics = [#tpu.dimension_semantics<parallel>], iteration_bounds = array<i64: 1>, scalar_prefetch = 0 : i64, scratch_operands = 0 : i64, tpu.core_type = #tpu.core_type<tc>, window_params = [{transform_indices = @transform_0, window_bounds = array<i64: 64, 16>}, {pipeline_mode = #tpu.pipeline_mode<synchronous>, transform_indices = @transform_1, window_bounds = array<i64: 16, 1024>}, {pipeline_mode = #tpu.pipeline_mode<synchronous>, transform_indices = @transform_2, window_bounds = array<i64: 1, 1024>}, {transform_indices = @transform_3, window_bounds = array<i64: 64, 1024>}]} {
    %c0 = arith.constant 0 : index
    %c0_0 = arith.constant 0 : index
    %0 = vector.load %arg1[%c0, %c0_0] : memref<64x16xbf16, #tpu.memory_space<vmem>>, vector<64x16xbf16>
    %c0_1 = arith.constant 0 : index
    %c0_2 = arith.constant 0 : index
    %1 = vector.load %arg2[%c0_1, %c0_2] : memref<16x1024xbf16, #tpu.memory_space<vmem>>, vector<16x1024xbf16>
    %cst = arith.constant dense<0.000000e+00> : vector<64x1024xf32>
    %2 = tpu.matmul %0, %1, %cst {dimension_numbers = #tpu.dot_dimension_numbers<[1], [0], [0], [1], [0, 0, 1, 1], [], []>} : vector<64x16xbf16>, vector<16x1024xbf16>, vector<64x1024xf32> -> vector<64x1024xf32>
    %c0_3 = arith.constant 0 : index
    %c0_4 = arith.constant 0 : index
    %3 = vector.load %arg3[%c0_3, %c0_4] : memref<1x1024xf32, #tpu.memory_space<vmem>>, vector<1x1024xf32>
    %4 = vector.broadcast %3 : vector<1x1024xf32> to vector<64x1024xf32>
    %5 = arith.addf %2, %4 : vector<64x1024xf32>
    %6 = arith.truncf %5 : vector<64x1024xf32> to vector<64x1024xbf16>
    %c0_5 = arith.constant 0 : index
    %c0_6 = arith.constant 0 : index
    %7 = vector.load %arg4[%c0_5, %c0_6] : memref<64x1024xbf16, #tpu.memory_space<vmem>>, vector<64x1024xbf16>
    tpu.vector_store %arg4[%c0_5, %c0_6], %6 {strides = array<i32>} : memref<64x1024xbf16, #tpu.memory_space<vmem>>, vector<64x1024xbf16>,
    return
  }
  func.func @transform_0(%arg0: i32) -> (i32, i32) {
    %c0_i32 = arith.constant 0 : i32
    %c0_i32_0 = arith.constant 0 : i32
    return %arg0, %c0_i32 : i32, i32
  }
  func.func @transform_1(%arg0: i32) -> (i32, i32) {
    %c0_i32 = arith.constant 0 : i32
    %c0_i32_0 = arith.constant 0 : i32
    %c0_i32_1 = arith.constant 0 : i32
    return %c0_i32, %c0_i32_0 : i32, i32
  }
  func.func @transform_2(%arg0: i32) -> (i32, i32) {
    %c0_i32 = arith.constant 0 : i32
    %c0_i32_0 = arith.constant 0 : i32
    %c0_i32_1 = arith.constant 0 : i32
    return %c0_i32, %c0_i32_0 : i32, i32
  }
  func.func @transform_3(%arg0: i32) -> (i32, i32) {
    %c0_i32 = arith.constant 0 : i32
    %c0_i32_0 = arith.constant 0 : i32
    return %arg0, %c0_i32 : i32, i32
  }
}

</mosaic_0001>

<llo_original>
// kernel: tpu_custom_call.1
$region0: #{tpu_custom_call.1}
  #allocation0 [shape = 'u32[]', space=smem, size = 0x4, offset = 0x4, fixed_abs, tag = 'smem constant byte address 0x4 - core index']
  #allocation1 [shape = 'u32[144,128]{1,0:T(1,128)}', space=vmem, size = 0x12000, scoped, tag = 'internal scratch']
  %s0 = inlined_call_operand.vmem [shape: bf16[64,16], index: 0, kind: input, shape index: {}]
  %s1 = inlined_call_operand.hbm [shape: bf16[16,1024], index: 1, kind: input, shape index: {}]
  %s2 = inlined_call_operand.vmem [shape: f32[1,1024], index: 2, kind: input, shape index: {}]
  %s3 = inlined_call_operand.hbm [shape: bf16[64,1024], index: 3, kind: output, shape index: {}]
  %s4 = sld [smem:[#allocation0]]
  $region26: #{tpu_custom_call.1} parent=0
    _
  %s6 = ssub.s32 1, %s4
  %s7 = scalar_select 0, %s6, %s4
  $region1: #{tpu_custom_call.1} parent=0
    #allocation2 [shape = 'u8[32768]{0}', space=vmem, size = 0x8000, scoped, tag = 'input window, operand 1, single buffered']
    #allocation3 [shape = 's32[1]{0}', space=sflag, size = 0x4, scoped, tag = 'scoped memory for tpu_custom_call.1']
    #allocation4 [shape = 's32[1]{0}', space=sflag, size = 0x4, scoped, tag = 'scoped memory for tpu_custom_call.1']
    #allocation5 [shape = 'u8[131072]{0}', space=vmem, size = 0x20000, scoped, tag = 'output window, operand 0, single buffered']
    %8 = vsyncpa [#allocation3], 0
    %9 = vsyncpa [#allocation4], 0
    // Predicated region
    $region2: #{tpu_custom_call.1} parent=1 // pred_check
      _
    $region3: #{tpu_custom_call.1} parent=1 // pred_check_branch
      %11 = sbr.rel (0) target = $region5
    $region4: #{tpu_custom_call.1} parent=1 // pred_region
      _
    $region5: #{tpu_custom_call.1} parent=1 // pred_fallthru
      _
    // Predicated region
    $region6: #{tpu_custom_call.1} parent=1 // pred_check
      _
    $region7: #{tpu_custom_call.1} parent=1 // pred_check_branch
      %13 = sbr.rel (0) target = $region9
    $region8: #{tpu_custom_call.1} parent=1 // pred_region
      %s15 = ssub.s32 1024, 1024
      %16 = vsyncadd [#allocation3], %s15
      %s17 = sshll.u32 [#allocation2], 4
      %s18 = int_to_ptr.vmem [resolvable:$true] %s17
      %23 = dma.hbm_to_vmem [thread:$0]  %s1, 1024, %s18, [#allocation3], 512, 512, 32
    $region9: #{tpu_custom_call.1} parent=1 // pred_fallthru
      _
    // Predicated region
    $region10: #{tpu_custom_call.1} parent=1 // pred_check
      _
    $region11: #{tpu_custom_call.1} parent=1 // pred_check_branch
      %25 = sbr.rel (0) target = $region13
    $region12: #{tpu_custom_call.1} parent=1 // pred_region
      _
    $region13: #{tpu_custom_call.1} parent=1 // pred_fallthru
      _
    // Predicated region
    $region14: #{tpu_custom_call.1} parent=1 // pred_check
      _
    $region15: #{tpu_custom_call.1} parent=1 // pred_check_branch
      %27 = sbr.rel (0) target = $region17
    $region16: #{tpu_custom_call.1} parent=1 // pred_region
      %28 = dma.done [#allocation3], 1024
    $region17: #{tpu_custom_call.1} parent=1 // pred_fallthru
      _
    %v30 = vld [vmem:[%s0] sm:$0xf]
    %v31 = vld [vmem:[%s0 + $0x4] sm:$0xf]
    %v32 = vld [vmem:[%s0 + $0x8] sm:$0xf]
    %v33 = vld [vmem:[%s0 + $0xc] sm:$0xf]
    %v34 = vld [vmem:[%s0 + $0x10] sm:$0xf]
    %v35 = vld [vmem:[%s0 + $0x14] sm:$0xf]
    %v36 = vld [vmem:[%s0 + $0x18] sm:$0xf]
    %v37 = vld [vmem:[%s0 + $0x1c] sm:$0xf]
    %v38 = vld [vmem:[#allocation2] sm:$0xff]
    %v39 = vld [vmem:[#allocation2 + $0x8] sm:$0xff]
    %v40 = vld [vmem:[#allocation2 + $0x10] sm:$0xff]
    %v41 = vld [vmem:[#allocation2 + $0x18] sm:$0xff]
    %v42 = vld [vmem:[#allocation2 + $0x20] sm:$0xff]
    %v43 = vld [vmem:[#allocation2 + $0x28] sm:$0xff]
    %v44 = vld [vmem:[#allocation2 + $0x30] sm:$0xff]
    %v45 = vld [vmem:[#allocation2 + $0x38] sm:$0xff]
    %v46 = vld [vmem:[%s2] sm:$0xff]
    %v48 = vlaneseq
    %v49 = vshrl.u32 %v48, 7
    %v50 = vsub.s32 0, %v49
    %v51 = vrot.slane %v46, %v50
    %v52 = vlaneseq
    %v53 = vshrl.u32 %v52, 7
    %v54 = vsub.s32 1, %v53
    %v55 = vrot.slane %v46, %v54
    %v56 = vlaneseq
    %v57 = vshrl.u32 %v56, 7
    %v58 = vsub.s32 2, %v57
    %v59 = vrot.slane %v46, %v58
    %v60 = vlaneseq
    %v61 = vshrl.u32 %v60, 7
    %v62 = vsub.s32 3, %v61
    %v63 = vrot.slane %v46, %v62
    %v64 = vlaneseq
    %v65 = vshrl.u32 %v64, 7
    %v66 = vsub.s32 4, %v65
    %v67 = vrot.slane %v46, %v66
    %v68 = vlaneseq
    %v69 = vshrl.u32 %v68, 7
    %v70 = vsub.s32 5, %v69
    %v71 = vrot.slane %v46, %v70
    %v72 = vlaneseq
    %v73 = vshrl.u32 %v72, 7
    %v74 = vsub.s32 6, %v73
    %v75 = vrot.slane %v46, %v74
    %v76 = vlaneseq
    %v77 = vshrl.u32 %v76, 7
    %v78 = vsub.s32 7, %v77
    %v79 = vrot.slane %v46, %v78
    %v96 = vunpack.c.l.b16 %v30
    %v97 = vunpack.c.l.b16 %v31
    %v98 = vunpack.c.l.b16 %v32
    %v99 = vunpack.c.l.b16 %v33
    %v100 = vunpack.c.l.b16 %v34
    %v101 = vunpack.c.l.b16 %v35
    %v102 = vunpack.c.l.b16 %v36
    %v103 = vunpack.c.l.b16 %v37
    %v104 = vpack.c.b16 %v97, %v96
    %v105 = vpack.c.b16 %v99, %v98
    %v106 = vpack.c.b16 %v101, %v100
    %v107 = vpack.c.b16 %v103, %v102
    %v116 = vunpack.c.l.b16 %v38
    %v117 = vunpack.c.h.b16 %v38
    %v118 = vunpack.c.l.b16 %v39
    %v119 = vunpack.c.h.b16 %v39
    %v120 = vunpack.c.l.b16 %v40
    %v121 = vunpack.c.h.b16 %v40
    %v122 = vunpack.c.l.b16 %v41
    %v123 = vunpack.c.h.b16 %v41
    %v124 = vunpack.c.l.b16 %v42
    %v125 = vunpack.c.h.b16 %v42
    %v126 = vunpack.c.l.b16 %v43
    %v127 = vunpack.c.h.b16 %v43
    %v128 = vunpack.c.l.b16 %v44
    %v129 = vunpack.c.h.b16 %v44
    %v130 = vunpack.c.l.b16 %v45
    %v131 = vunpack.c.h.b16 %v45
    %v132 = vpack.c.b16 %v124, %v116
    %v133 = vpack.c.b16 %v125, %v117
    %v134 = vpack.c.b16 %v126, %v118
    %v135 = vpack.c.b16 %v127, %v119
    %v136 = vpack.c.b16 %v128, %v120
    %v137 = vpack.c.b16 %v129, %v121
    %v138 = vpack.c.b16 %v130, %v122
    %v139 = vpack.c.b16 %v131, %v123
    %vm148 = vcmask 130048
    %v150 = vsel %vm148, %v104, 0
    %v153 = vsel %vm148, %v105, 0
    %v156 = vsel %vm148, %v106, 0
    %v159 = vsel %vm148, %v107, 0
    %161 = vmatprep.subr.bf16.mxu0 %v133
    %162 = vmatpush1.bf16.msra.mxu0 %v132
    %163 = vmatprep.subr.bf16.mxu0 0
    %164 = vmatpush1.bf16.msra.mxu0 0
    %165 = vmatprep.subr.bf16.mxu0 0
    %166 = vmatpush1.bf16.msra.mxu0 0
    %167 = vmatprep.subr.bf16.mxu0 0
    %168 = vmatpush1.bf16.msra.mxu0 0
    %169 = vmatprep.subr.bf16.mxu0 0
    %170 = vmatpush1.bf16.msra.mxu0 0
    %171 = vmatprep.subr.bf16.mxu0 0
    %172 = vmatpush1.bf16.msra.mxu0 0
    %173 = vmatprep.subr.bf16.mxu0 0
    %174 = vmatpush1.bf16.msra.mxu0 0
    %175 = vmatprep.subr.bf16.mxu0 0
    %176 = vmatpush1.bf16.msra.mxu0 0
    %177 = vmatprep.subr.bf16.mxu0 0
    %178 = vmatpush1.bf16.msra.mxu0 0
    %179 = vmatprep.subr.bf16.mxu0 0
    %180 = vmatpush1.bf16.msra.mxu0 0
    %181 = vmatprep.subr.bf16.mxu0 0
    %182 = vmatpush1.bf16.msra.mxu0 0
    %183 = vmatprep.subr.bf16.mxu0 0
    %184 = vmatpush1.bf16.msra.mxu0 0
    %185 = vmatprep.subr.bf16.mxu0 0
    %186 = vmatpush1.bf16.msra.mxu0 0
    %187 = vmatprep.subr.bf16.mxu0 0
    %188 = vmatpush1.bf16.msra.mxu0 0
    %189 = vmatprep.subr.bf16.mxu0 0
    %190 = vmatpush1.bf16.msra.mxu0 0
    %191 = vmatprep.subr.bf16.mxu0 0
    %192 = vmatpush1.bf16.msra.mxu0 0
    %193 = vmatprep.mubr.bf16.mxu0 0
    %194 = vmatmul.mubr.bf16.gmra.mrb[0].mxu0 %v150
    %v195 = vpop.f32.mrb[0].mxu0
    %v196 = vadd.f32 %v51, %v195
    %v197 = vpop.f32.mrb[0].mxu0
    %v198 = vadd.f32 %v55, %v197
    %v199 = vpop.f32.mrb[0].mxu0
    %v200 = vadd.f32 %v51, %v199
    %v201 = vpop.f32.mrb[0].mxu0
    %v202 = vadd.f32 %v55, %v201
    %203 = vmatprep.mubr.bf16.mxu0 0
    %204 = vmatmul.mubr.bf16.gmra.mrb[0].mxu0 %v153
    %v205 = vpop.f32.mrb[0].mxu0
    %v206 = vadd.f32 %v51, %v205
    %v207 = vpop.f32.mrb[0].mxu0
    %v208 = vadd.f32 %v55, %v207
    %v209 = vpop.f32.mrb[0].mxu0
    %v210 = vadd.f32 %v51, %v209
    %v211 = vpop.f32.mrb[0].mxu0
    %v212 = vadd.f32 %v55, %v211
    %213 = vmatprep.mubr.bf16.mxu0 0
    %214 = vmatmul.mubr.bf16.gmra.mrb[0].mxu0 %v156
    %v215 = vpop.f32.mrb[0].mxu0
    %v216 = vadd.f32 %v51, %v215
    %v217 = vpop.f32.mrb[0].mxu0
    %v218 = vadd.f32 %v55, %v217
    %v219 = vpop.f32.mrb[0].mxu0
    %v220 = vadd.f32 %v51, %v219
    %v221 = vpop.f32.mrb[0].mxu0
    %v222 = vadd.f32 %v55, %v221
    %223 = vmatprep.mubr.bf16.mxu0 0
    %224 = vmatmul.mubr.bf16.gmra.mrb[0].mxu0 %v159
    %v225 = vpop.f32.mrb[0].mxu0
    %v226 = vadd.f32 %v51, %v225
    %v227 = vpop.f32.mrb[0].mxu0
    %v228 = vadd.f32 %v55, %v227
    %v229 = vpop.f32.mrb[0].mxu0
    %v230 = vadd.f32 %v51, %v229
    %v231 = vpop.f32.mrb[0].mxu0
    %v232 = vadd.f32 %v55, %v231
    %233 = vdwg.mxu0
    %234 = vmatprep.subr.bf16.mxu0 %v135
    %235 = vmatpush1.bf16.msra.mxu0 %v134
    %236 = vmatprep.subr.bf16.mxu0 0
    %237 = vmatpush1.bf16.msra.mxu0 0
    %238 = vmatprep.subr.bf16.mxu0 0
    %239 = vmatpush1.bf16.msra.mxu0 0
    %240 = vmatprep.subr.bf16.mxu0 0
    %241 = vmatpush1.bf16.msra.mxu0 0
    %242 = vmatprep.subr.bf16.mxu0 0
    %243 = vmatpush1.bf16.msra.mxu0 0
    %244 = vmatprep.subr.bf16.mxu0 0
    %245 = vmatpush1.bf16.msra.mxu0 0
    %246 = vmatprep.subr.bf16.mxu0 0
    %247 = vmatpush1.bf16.msra.mxu0 0
    %248 = vmatprep.subr.bf16.mxu0 0
    %249 = vmatpush1.bf16.msra.mxu0 0
    %250 = vmatprep.subr.bf16.mxu0 0
    %251 = vmatpush1.bf16.msra.mxu0 0
    %252 = vmatprep.subr.bf16.mxu0 0
    %253 = vmatpush1.bf16.msra.mxu0 0
    %254 = vmatprep.subr.bf16.mxu0 0
    %255 = vmatpush1.bf16.msra.mxu0 0
    %256 = vmatprep.subr.bf16.mxu0 0
    %257 = vmatpush1.bf16.msra.mxu0 0
    %258 = vmatprep.subr.bf16.mxu0 0
    %259 = vmatpush1.bf16.msra.mxu0 0
    %260 = vmatprep.subr.bf16.mxu0 0
    %261 = vmatpush1.bf16.msra.mxu0 0
    %262 = vmatprep.subr.bf16.mxu0 0
    %263 = vmatpush1.bf16.msra.mxu0 0
    %264 = vmatprep.subr.bf16.mxu0 0
    %265 = vmatpush1.bf16.msra.mxu0 0
    %266 = vmatprep.mubr.bf16.mxu0 0
    %267 = vmatmul.mubr.bf16.gmra.mrb[0].mxu0 %v150
    %v268 = vpop.f32.mrb[0].mxu0
    %v269 = vadd.f32 %v59, %v268
    %v270 = vpop.f32.mrb[0].mxu0
    %v271 = vadd.f32 %v63, %v270
    %v272 = vpop.f32.mrb[0].mxu0
    %v273 = vadd.f32 %v59, %v272
    %v274 = vpop.f32.mrb[0].mxu0
    %v275 = vadd.f32 %v63, %v274
    %276 = vmatprep.mubr.bf16.mxu0 0
    %277 = vmatmul.mubr.bf16.gmra.mrb[0].mxu0 %v153
    %v278 = vpop.f32.mrb[0].mxu0
    %v279 = vadd.f32 %v59, %v278
    %v280 = vpop.f32.mrb[0].mxu0
    %v281 = vadd.f32 %v63, %v280
    %v282 = vpop.f32.mrb[0].mxu0
    %v283 = vadd.f32 %v59, %v282
    %v284 = vpop.f32.mrb[0].mxu0
    %v285 = vadd.f32 %v63, %v284
    %286 = vmatprep.mubr.bf16.mxu0 0
    %287 = vmatmul.mubr.bf16.gmra.mrb[0].mxu0 %v156
    %v288 = vpop.f32.mrb[0].mxu0
    %v289 = vadd.f32 %v59, %v288
    %v290 = vpop.f32.mrb[0].mxu0
    %v291 = vadd.f32 %v63, %v290
    %v292 = vpop.f32.mrb[0].mxu0
    %v293 = vadd.f32 %v59, %v292
    %v294 = vpop.f32.mrb[0].mxu0
    %v295 = vadd.f32 %v63, %v294
    %296 = vmatprep.mubr.bf16.mxu0 0
    %297 = vmatmul.mubr.bf16.gmra.mrb[0].mxu0 %v159
    %v298 = vpop.f32.mrb[0].mxu0
    %v299 = vadd.f32 %v59, %v298
    %v300 = vpop.f32.mrb[0].mxu0
    %v301 = vadd.f32 %v63, %v300
    %v302 = vpop.f32.mrb[0].mxu0
    %v303 = vadd.f32 %v59, %v302
    %v304 = vpop.f32.mrb[0].mxu0
    %v305 = vadd.f32 %v63, %v304
    %306 = vdwg.mxu0
    %307 = vmatprep.subr.bf16.mxu0 %v137
    %308 = vmatpush1.bf16.msra.mxu0 %v136
    %309 = vmatprep.subr.bf16.mxu0 0
    %310 = vmatpush1.bf16.msra.mxu0 0
    %311 = vmatprep.subr.bf16.mxu0 0
    %312 = vmatpush1.bf16.msra.mxu0 0
    %313 = vmatprep.subr.bf16.mxu0 0
    %314 = vmatpush1.bf16.msra.mxu0 0
    %315 = vmatprep.subr.bf16.mxu0 0
    %316 = vmatpush1.bf16.msra.mxu0 0
    %317 = vmatprep.subr.bf16.mxu0 0
    %318 = vmatpush1.bf16.msra.mxu0 0
    %319 = vmatprep.subr.bf16.mxu0 0
    %320 = vmatpush1.bf16.msra.mxu0 0
    %321 = vmatprep.subr.bf16.mxu0 0
    %322 = vmatpush1.bf16.msra.mxu0 0
    %323 = vmatprep.subr.bf16.mxu0 0
    %324 = vmatpush1.bf16.msra.mxu0 0
    %325 = vmatprep.subr.bf16.mxu0 0
    %326 = vmatpush1.bf16.msra.mxu0 0
    %327 = vmatprep.subr.bf16.mxu0 0
    %328 = vmatpush1.bf16.msra.mxu0 0
    %329 = vmatprep.subr.bf16.mxu0 0
    %330 = vmatpush1.bf16.msra.mxu0 0
    %331 = vmatprep.subr.bf16.mxu0 0
    %332 = vmatpush1.bf16.msra.mxu0 0
    %333 = vmatprep.subr.bf16.mxu0 0
    %334 = vmatpush1.bf16.msra.mxu0 0
    %335 = vmatprep.subr.bf16.mxu0 0
    %336 = vmatpush1.bf16.msra.mxu0 0
    %337 = vmatprep.subr.bf16.mxu0 0
    %338 = vmatpush1.bf16.msra.mxu0 0
    %339 = vmatprep.mubr.bf16.mxu0 0
    %340 = vmatmul.mubr.bf16.gmra.mrb[0].mxu0 %v150
    %v341 = vpop.f32.mrb[0].mxu0
    %v342 = vadd.f32 %v67, %v341
    %v343 = vpop.f32.mrb[0].mxu0
    %v344 = vadd.f32 %v71, %v343
    %v345 = vpop.f32.mrb[0].mxu0
    %v346 = vadd.f32 %v67, %v345
    %v347 = vpop.f32.mrb[0].mxu0
    %v348 = vadd.f32 %v71, %v347
    %349 = vmatprep.mubr.bf16.mxu0 0
    %350 = vmatmul.mubr.bf16.gmra.mrb[0].mxu0 %v153
    %v351 = vpop.f32.mrb[0].mxu0
    %v352 = vadd.f32 %v67, %v351
    %v353 = vpop.f32.mrb[0].mxu0
    %v354 = vadd.f32 %v71, %v353
    %v355 = vpop.f32.mrb[0].mxu0
    %v356 = vadd.f32 %v67, %v355
    %v357 = vpop.f32.mrb[0].mxu0
    %v358 = vadd.f32 %v71, %v357
    %359 = vmatprep.mubr.bf16.mxu0 0
    %360 = vmatmul.mubr.bf16.gmra.mrb[0].mxu0 %v156
    %v361 = vpop.f32.mrb[0].mxu0
    %v362 = vadd.f32 %v67, %v361
    %v363 = vpop.f32.mrb[0].mxu0
    %v364 = vadd.f32 %v71, %v363
    %v365 = vpop.f32.mrb[0].mxu0
    %v366 = vadd.f32 %v67, %v365
    %v367 = vpop.f32.mrb[0].mxu0
    %v368 = vadd.f32 %v71, %v367
    %369 = vmatprep.mubr.bf16.mxu0 0
    %370 = vmatmul.mubr.bf16.gmra.mrb[0].mxu0 %v159
    %v371 = vpop.f32.mrb[0].mxu0
    %v372 = vadd.f32 %v67, %v371
    %v373 = vpop.f32.mrb[0].mxu0
    %v374 = vadd.f32 %v71, %v373
    %v375 = vpop.f32.mrb[0].mxu0
    %v376 = vadd.f32 %v67, %v375
    %v377 = vpop.f32.mrb[0].mxu0
    %v378 = vadd.f32 %v71, %v377
    %379 = vdwg.mxu0
    %380 = vmatprep.subr.bf16.mxu0 %v139
    %381 = vmatpush1.bf16.msra.mxu0 %v138
    %382 = vmatprep.subr.bf16.mxu0 0
    %383 = vmatpush1.bf16.msra.mxu0 0
    %384 = vmatprep.subr.bf16.mxu0 0
    %385 = vmatpush1.bf16.msra.mxu0 0
    %386 = vmatprep.subr.bf16.mxu0 0
    %387 = vmatpush1.bf16.msra.mxu0 0
    %388 = vmatprep.subr.bf16.mxu0 0
    %389 = vmatpush1.bf16.msra.mxu0 0
    %390 = vmatprep.subr.bf16.mxu0 0
    %391 = vmatpush1.bf16.msra.mxu0 0
    %392 = vmatprep.subr.bf16.mxu0 0
    %393 = vmatpush1.bf16.msra.mxu0 0
    %394 = vmatprep.subr.bf16.mxu0 0
    %395 = vmatpush1.bf16.msra.mxu0 0
    %396 = vmatprep.subr.bf16.mxu0 0
    %397 = vmatpush1.bf16.msra.mxu0 0
    %398 = vmatprep.subr.bf16.mxu0 0
    %399 = vmatpush1.bf16.msra.mxu0 0
    %400 = vmatprep.subr.bf16.mxu0 0
    %401 = vmatpush1.bf16.msra.mxu0 0
    %402 = vmatprep.subr.bf16.mxu0 0
    %403 = vmatpush1.bf16.msra.mxu0 0
    %404 = vmatprep.subr.bf16.mxu0 0
    %405 = vmatpush1.bf16.msra.mxu0 0
    %406 = vmatprep.subr.bf16.mxu0 0
    %407 = vmatpush1.bf16.msra.mxu0 0
    %408 = vmatprep.subr.bf16.mxu0 0
    %409 = vmatpush1.bf16.msra.mxu0 0
    %410 = vmatprep.subr.bf16.mxu0 0
    %411 = vmatpush1.bf16.msra.mxu0 0
    %412 = vmatprep.mubr.bf16.mxu0 0
    %413 = vmatmul.mubr.bf16.gmra.mrb[0].mxu0 %v150
    %v414 = vpop.f32.mrb[0].mxu0
    %v415 = vadd.f32 %v75, %v414
    %v416 = vpop.f32.mrb[0].mxu0
    %v417 = vadd.f32 %v79, %v416
    %v418 = vpop.f32.mrb[0].mxu0
    %v419 = vadd.f32 %v75, %v418
    %v420 = vpop.f32.mrb[0].mxu0
    %v421 = vadd.f32 %v79, %v420
    %422 = vmatprep.mubr.bf16.mxu0 0
    %423 = vmatmul.mubr.bf16.gmra.mrb[0].mxu0 %v153
    %v424 = vpop.f32.mrb[0].mxu0
    %v425 = vadd.f32 %v75, %v424
    %v426 = vpop.f32.mrb[0].mxu0
    %v427 = vadd.f32 %v79, %v426
    %v428 = vpop.f32.mrb[0].mxu0
    %v429 = vadd.f32 %v75, %v428
    %v430 = vpop.f32.mrb[0].mxu0
    %v431 = vadd.f32 %v79, %v430
    %432 = vmatprep.mubr.bf16.mxu0 0
    %433 = vmatmul.mubr.bf16.gmra.mrb[0].mxu0 %v156
    %v434 = vpop.f32.mrb[0].mxu0
    %v435 = vadd.f32 %v75, %v434
    %v436 = vpop.f32.mrb[0].mxu0
    %v437 = vadd.f32 %v79, %v436
    %v438 = vpop.f32.mrb[0].mxu0
    %v439 = vadd.f32 %v75, %v438
    %v440 = vpop.f32.mrb[0].mxu0
    %v441 = vadd.f32 %v79, %v440
    %442 = vmatprep.mubr.bf16.mxu0 0
    %443 = vmatmul.mubr.bf16.gmra.mrb[0].mxu0 %v159
    %v444 = vpop.f32.mrb[0].mxu0
    %v445 = vadd.f32 %v75, %v444
    %v446 = vpop.f32.mrb[0].mxu0
    %v447 = vadd.f32 %v79, %v446
    %v448 = vpop.f32.mrb[0].mxu0
    %v449 = vadd.f32 %v75, %v448
    %v450 = vpop.f32.mrb[0].mxu0
    %v451 = vadd.f32 %v79, %v450
    %452 = vdwg.mxu0
    %v453 = vpack.c.bf16 %v200, %v196
    %v454 = vpack.c.bf16 %v202, %v198
    %v455 = vpack.c.bf16 %v273, %v269
    %v456 = vpack.c.bf16 %v275, %v271
    %v457 = vpack.c.bf16 %v346, %v342
    %v458 = vpack.c.bf16 %v348, %v344
    %v459 = vpack.c.bf16 %v419, %v415
    %v460 = vpack.c.bf16 %v421, %v417
    %v461 = vpack.c.bf16 %v210, %v206
    %v462 = vpack.c.bf16 %v212, %v208
    %v463 = vpack.c.bf16 %v283, %v279
    %v464 = vpack.c.bf16 %v285, %v281
    %v465 = vpack.c.bf16 %v356, %v352
    %v466 = vpack.c.bf16 %v358, %v354
    %v467 = vpack.c.bf16 %v429, %v425
    %v468 = vpack.c.bf16 %v431, %v427
    %v469 = vpack.c.bf16 %v220, %v216
    %v470 = vpack.c.bf16 %v222, %v218
    %v471 = vpack.c.bf16 %v293, %v289
    %v472 = vpack.c.bf16 %v295, %v291
    %v473 = vpack.c.bf16 %v366, %v362
    %v474 = vpack.c.bf16 %v368, %v364
    %v475 = vpack.c.bf16 %v439, %v435
    %v476 = vpack.c.bf16 %v441, %v437
    %v477 = vpack.c.bf16 %v230, %v226
    %v478 = vpack.c.bf16 %v232, %v228
    %v479 = vpack.c.bf16 %v303, %v299
    %v480 = vpack.c.bf16 %v305, %v301
    %v481 = vpack.c.bf16 %v376, %v372
    %v482 = vpack.c.bf16 %v378, %v374
    %v483 = vpack.c.bf16 %v449, %v445
    %v484 = vpack.c.bf16 %v451, %v447
    %v517 = vunpack.c.l.b16 %v453
    %v518 = vunpack.c.l.b16 %v454
    %v519 = vunpack.c.l.b16 %v455
    %v520 = vunpack.c.l.b16 %v456
    %v521 = vunpack.c.l.b16 %v457
    %v522 = vunpack.c.l.b16 %v458
    %v523 = vunpack.c.l.b16 %v459
    %v524 = vunpack.c.l.b16 %v460
    %v525 = vunpack.c.h.b16 %v453
    %v526 = vunpack.c.h.b16 %v454
    %v527 = vunpack.c.h.b16 %v455
    %v528 = vunpack.c.h.b16 %v456
    %v529 = vunpack.c.h.b16 %v457
    %v530 = vunpack.c.h.b16 %v458
    %v531 = vunpack.c.h.b16 %v459
    %v532 = vunpack.c.h.b16 %v460
    %v533 = vunpack.c.l.b16 %v461
    %v534 = vunpack.c.l.b16 %v462
    %v535 = vunpack.c.l.b16 %v463
    %v536 = vunpack.c.l.b16 %v464
    %v537 = vunpack.c.l.b16 %v465
    %v538 = vunpack.c.l.b16 %v466
    %v539 = vunpack.c.l.b16 %v467
    %v540 = vunpack.c.l.b16 %v468
    %v541 = vunpack.c.h.b16 %v461
    %v542 = vunpack.c.h.b16 %v462
    %v543 = vunpack.c.h.b16 %v463
    %v544 = vunpack.c.h.b16 %v464
    %v545 = vunpack.c.h.b16 %v465
    %v546 = vunpack.c.h.b16 %v466
    %v547 = vunpack.c.h.b16 %v467
    %v548 = vunpack.c.h.b16 %v468
    %v549 = vunpack.c.l.b16 %v469
    %v550 = vunpack.c.l.b16 %v470
    %v551 = vunpack.c.l.b16 %v471
    %v552 = vunpack.c.l.b16 %v472
    %v553 = vunpack.c.l.b16 %v473
    %v554 = vunpack.c.l.b16 %v474
    %v555 = vunpack.c.l.b16 %v475
    %v556 = vunpack.c.l.b16 %v476
    %v557 = vunpack.c.h.b16 %v469
    %v558 = vunpack.c.h.b16 %v470
    %v559 = vunpack.c.h.b16 %v471
    %v560 = vunpack.c.h.b16 %v472
    %v561 = vunpack.c.h.b16 %v473
    %v562 = vunpack.c.h.b16 %v474
    %v563 = vunpack.c.h.b16 %v475
    %v564 = vunpack.c.h.b16 %v476
    %v565 = vunpack.c.l.b16 %v477
    %v566 = vunpack.c.l.b16 %v478
    %v567 = vunpack.c.l.b16 %v479
    %v568 = vunpack.c.l.b16 %v480
    %v569 = vunpack.c.l.b16 %v481
    %v570 = vunpack.c.l.b16 %v482
    %v571 = vunpack.c.l.b16 %v483
    %v572 = vunpack.c.l.b16 %v484
    %v573 = vunpack.c.h.b16 %v477
    %v574 = vunpack.c.h.b16 %v478
    %v575 = vunpack.c.h.b16 %v479
    %v576 = vunpack.c.h.b16 %v480
    %v577 = vunpack.c.h.b16 %v481
    %v578 = vunpack.c.h.b16 %v482
    %v579 = vunpack.c.h.b16 %v483
    %v580 = vunpack.c.h.b16 %v484
    %v581 = vpack.c.b16 %v518, %v517
    %v582 = vpack.c.b16 %v520, %v519
    %v583 = vpack.c.b16 %v522, %v521
    %v584 = vpack.c.b16 %v524, %v523
    %v585 = vpack.c.b16 %v526, %v525
    %v586 = vpack.c.b16 %v528, %v527
    %v587 = vpack.c.b16 %v530, %v529
    %v588 = vpack.c.b16 %v532, %v531
    %v589 = vpack.c.b16 %v534, %v533
    %v590 = vpack.c.b16 %v536, %v535
    %v591 = vpack.c.b16 %v538, %v537
    %v592 = vpack.c.b16 %v540, %v539
    %v593 = vpack.c.b16 %v542, %v541
    %v594 = vpack.c.b16 %v544, %v543
    %v595 = vpack.c.b16 %v546, %v545
    %v596 = vpack.c.b16 %v548, %v547
    %v597 = vpack.c.b16 %v550, %v549
    %v598 = vpack.c.b16 %v552, %v551
    %v599 = vpack.c.b16 %v554, %v553
    %v600 = vpack.c.b16 %v556, %v555
    %v601 = vpack.c.b16 %v558, %v557
    %v602 = vpack.c.b16 %v560, %v559
    %v603 = vpack.c.b16 %v562, %v561
    %v604 = vpack.c.b16 %v564, %v563
    %v605 = vpack.c.b16 %v566, %v565
    %v606 = vpack.c.b16 %v568, %v567
    %v607 = vpack.c.b16 %v570, %v569
    %v608 = vpack.c.b16 %v572, %v571
    %v609 = vpack.c.b16 %v574, %v573
    %v610 = vpack.c.b16 %v576, %v575
    %v611 = vpack.c.b16 %v578, %v577
    %v612 = vpack.c.b16 %v580, %v579
    %645 = vst [vmem:[#allocation5] sm:$0xff] %v581
    %646 = vst [vmem:[#allocation5 + $0x8] sm:$0xff] %v582
    %647 = vst [vmem:[#allocation5 + $0x10] sm:$0xff] %v583
    %648 = vst [vmem:[#allocation5 + $0x18] sm:$0xff] %v584
    %649 = vst [vmem:[#allocation5 + $0x20] sm:$0xff] %v585
    %650 = vst [vmem:[#allocation5 + $0x28] sm:$0xff] %v586
    %651 = vst [vmem:[#allocation5 + $0x30] sm:$0xff] %v587
    %652 = vst [vmem:[#allocation5 + $0x38] sm:$0xff] %v588
    %653 = vst [vmem:[#allocation5 + $0x40] sm:$0xff] %v589
    %654 = vst [vmem:[#allocation5 + $0x48] sm:$0xff] %v590
    %655 = vst [vmem:[#allocation5 + $0x50] sm:$0xff] %v591
    %656 = vst [vmem:[#allocation5 + $0x58] sm:$0xff] %v592
    %657 = vst [vmem:[#allocation5 + $0x60] sm:$0xff] %v593
    %658 = vst [vmem:[#allocation5 + $0x68] sm:$0xff] %v594
    %659 = vst [vmem:[#allocation5 + $0x70] sm:$0xff] %v595
    %660 = vst [vmem:[#allocation5 + $0x78] sm:$0xff] %v596
    %661 = vst [vmem:[#allocation5 + $0x80] sm:$0xff] %v597
    %662 = vst [vmem:[#allocation5 + $0x88] sm:$0xff] %v598
    %663 = vst [vmem:[#allocation5 + $0x90] sm:$0xff] %v599
    %664 = vst [vmem:[#allocation5 + $0x98] sm:$0xff] %v600
    %665 = vst [vmem:[#allocation5 + $0xa0] sm:$0xff] %v601
    %666 = vst [vmem:[#allocation5 + $0xa8] sm:$0xff] %v602
    %667 = vst [vmem:[#allocation5 + $0xb0] sm:$0xff] %v603
    %668 = vst [vmem:[#allocation5 + $0xb8] sm:$0xff] %v604
    %669 = vst [vmem:[#allocation5 + $0xc0] sm:$0xff] %v605
    %670 = vst [vmem:[#allocation5 + $0xc8] sm:$0xff] %v606
    %671 = vst [vmem:[#allocation5 + $0xd0] sm:$0xff] %v607
    %672 = vst [vmem:[#allocation5 + $0xd8] sm:$0xff] %v608
    %673 = vst [vmem:[#allocation5 + $0xe0] sm:$0xff] %v609
    %674 = vst [vmem:[#allocation5 + $0xe8] sm:$0xff] %v610
    %675 = vst [vmem:[#allocation5 + $0xf0] sm:$0xff] %v611
    %676 = vst [vmem:[#allocation5 + $0xf8] sm:$0xff] %v612
    // Predicated region
    $region18: #{tpu_custom_call.1} parent=1 // pred_check
      _
    $region19: #{tpu_custom_call.1} parent=1 // pred_check_branch
      %678 = sbr.rel (0) target = $region21
    $region20: #{tpu_custom_call.1} parent=1 // pred_region
      %s680 = ssub.s32 4096, 4096
      %681 = vsyncadd [#allocation4], %s680
      %s682 = sshll.u32 [#allocation5], 4
      %s683 = int_to_ptr.vmem [resolvable:$true] %s682
      %688 = dma.vmem_to_hbm [thread:$0]  %s683, 4096, %s3, [#allocation4], 512, 512, 32
    $region21: #{tpu_custom_call.1} parent=1 // pred_fallthru
      _
    // Predicated region
    $region22: #{tpu_custom_call.1} parent=1 // pred_check
      _
    $region23: #{tpu_custom_call.1} parent=1 // pred_check_branch
      %690 = sbr.rel (0) target = $region25
    $region24: #{tpu_custom_call.1} parent=1 // pred_region
      %691 = dma.done [#allocation4], 4096
    $region25: #{tpu_custom_call.1} parent=1 // pred_fallthru
      _
    %692 = vsyncpa [#allocation3], 1
    %693 = vsyncpa [#allocation4], 1

</llo_original>
